<compile_context>
chip_gen: v6e
topology: v6e:2x2x1
jax: 0.10.0
libtpu: 0.0.40
codegen_flags: <defaults>
</compile_context>

<pallas_src>
import jax
import jax.numpy as jnp
from jax import lax
from jax.experimental import pallas as pl
from jax.experimental.pallas import tpu as pltpu


WKV_CHUNK = 32  # chunk length for the WKV5 recurrence (32-64 recommended)


def _round_up(x, m):
    return ((x + m - 1) // m) * m


# ----------------------------------------------------------------------------- #
# Tiled matmul kernel (bf16 MXU operands, f32 accumulation)
# ----------------------------------------------------------------------------- #
def _matmul_kernel(a_ref, b_ref, o_ref, acc_ref):
    @pl.when(pl.program_id(2) == 0)
    def _():
        acc_ref[...] = jnp.zeros_like(acc_ref)

    acc_ref[...] += jnp.dot(a_ref[...].astype(jnp.bfloat16),
                            b_ref[...].astype(jnp.bfloat16),
                            preferred_element_type=jnp.float32)

    @pl.when(pl.program_id(2) == pl.num_programs(2) - 1)
    def _():
        o_ref[...] = acc_ref[...].astype(o_ref.dtype)


def matmul_pallas(a, b, *, tm=256, tk=512, tn=256):
    """a: (M, K), b: (K, N) -> (M, N) f32.  Tiled + double-buffered, f32 accumulate."""
    M, K = a.shape
    K2, Nout = b.shape
    assert K == K2
    tm = min(tm, _round_up(M, 16))
    tk = min(tk, _round_up(K, 128))
    tn = min(tn, _round_up(Nout, 128))
    Mp, Kp, Np = _round_up(M, tm), _round_up(K, tk), _round_up(Nout, tn)
    a_p = a if (Mp == M and Kp == K) else jnp.pad(a, ((0, Mp - M), (0, Kp - K)))
    b_p = b if (Kp == K and Np == Nout) else jnp.pad(b, ((0, Kp - K), (0, Np - Nout)))

    out = pl.pallas_call(
        _matmul_kernel,
        out_shape=jax.ShapeDtypeStruct((Mp, Np), jnp.float32),
        grid=(Mp // tm, Np // tn, Kp // tk),
        in_specs=[pl.BlockSpec((tm, tk), lambda i, j, k: (i, k)),
                  pl.BlockSpec((tk, tn), lambda i, j, k: (k, j))],
        out_specs=pl.BlockSpec((tm, tn), lambda i, j, k: (i, j)),
        scratch_shapes=[pltpu.VMEM((tm, tn), jnp.float32)],
        compiler_params=pltpu.CompilerParams(
            dimension_semantics=("parallel", "parallel", "arbitrary")),
        cost_estimate=pl.CostEstimate(
            flops=2 * Mp * Np * Kp,
            transcendentals=0,
            bytes_accessed=(a_p.size * a_p.dtype.itemsize
                            + b_p.size * b_p.dtype.itemsize + Mp * Np * 4)),
    )(a_p, b_p)
    if Mp != M or Np != Nout:
        out = out[:M, :Nout]
    return out


# ----------------------------------------------------------------------------- #
# Fused time-shift-lerp + projection kernel:
#   out[j] = (x * mix[j] + xx * (1 - mix[j])) @ w[j]      for j = 0..J-1
# ----------------------------------------------------------------------------- #
def _mixproj_kernel(x_ref, xx_ref, mix_ref, w_ref, o_ref, acc_ref):
    @pl.when(pl.program_id(3) == 0)
    def _():
        acc_ref[...] = jnp.zeros_like(acc_ref)

    mu = mix_ref[...]                                       # (1, tk) f32
    a = x_ref[...] * mu + xx_ref[...] * (1.0 - mu)          # lerp in f32 on the VPU
    acc_ref[...] += jnp.dot(a.astype(jnp.bfloat16),
                            w_ref[...].astype(jnp.bfloat16),
                            preferred_element_type=jnp.float32)

    @pl.when(pl.program_id(3) == pl.num_programs(3) - 1)
    def _():
        o_ref[...] = acc_ref[...].astype(o_ref.dtype)


def mixproj_pallas(x2d, xx2d, mix, w, *, tm=256, tk=512, tn=256):
    """x2d/xx2d: (M, K) f32; mix: (J, K) f32; w: (J, K, N) -> (J, M, N) f32."""
    M, K = x2d.shape
    J, K2, Nout = w.shape
    assert K == K2 and mix.shape == (J, K)
    tm = min(tm, _round_up(M, 16))
    tk = min(tk, _round_up(K, 128))
    tn = min(tn, _round_up(Nout, 128))
    Mp, Kp, Np = _round_up(M, tm), _round_up(K, tk), _round_up(Nout, tn)

    if Mp != M or Kp != K:
        x_p = jnp.pad(x2d, ((0, Mp - M), (0, Kp - K)))
        xx_p = jnp.pad(xx2d, ((0, Mp - M), (0, Kp - K)))
    else:
        x_p, xx_p = x2d, xx2d
    mix3 = mix.reshape(J, 1, K)
    if Kp != K:
        mix3 = jnp.pad(mix3, ((0, 0), (0, 0), (0, Kp - K)))
    w_p = w if (Kp == K and Np == Nout) else jnp.pad(w, ((0, 0), (0, Kp - K), (0, Np - Nout)))

    out = pl.pallas_call(
        _mixproj_kernel,
        out_shape=jax.ShapeDtypeStruct((J, Mp, Np), jnp.float32),
        grid=(Mp // tm, J, Np // tn, Kp // tk),
        in_specs=[pl.BlockSpec((tm, tk), lambda m, j, n, k: (m, k)),
                  pl.BlockSpec((tm, tk), lambda m, j, n, k: (m, k)),
                  pl.BlockSpec((None, 1, tk), lambda m, j, n, k: (j, 0, k)),
                  pl.BlockSpec((None, tk, tn), lambda m, j, n, k: (j, k, n))],
        out_specs=pl.BlockSpec((None, tm, tn), lambda m, j, n, k: (j, m, n)),
        scratch_shapes=[pltpu.VMEM((tm, tn), jnp.float32)],
        compiler_params=pltpu.CompilerParams(
            dimension_semantics=("parallel", "parallel", "parallel", "arbitrary")),
        cost_estimate=pl.CostEstimate(
            flops=2 * J * Mp * Np * Kp + 3 * J * Mp * Kp,
            transcendentals=0,
            bytes_accessed=(2 * Mp * Kp * 4 + w_p.size * w_p.dtype.itemsize
                            + J * Mp * Np * 4)),
    )(x_p, xx_p, mix3, w_p)
    if Mp != M or Np != Nout:
        out = out[:, :M, :Nout]
    return out


# ----------------------------------------------------------------------------- #
# Chunkwise WKV5 recurrence kernel
#   per head:  y_t[j] = sum_i r_t[i] * (u[i]*k_t[i]*v_t[j] + S_{t-1}[i,j])
#              S_t[i,j] = w[i] * S_{t-1}[i,j] + k_t[i] * v_t[j],   w = exp(lw), lw = -exp(decay)
# ----------------------------------------------------------------------------- #
def _wkv5_chunk_kernel(r_ref, k_ref, v_ref, lw_ref, u_ref, o_ref, state_ref):
    # r/k/v/o: (L, N) f32 for the current (batch, head, chunk); lw/u: (1, N) f32
    # state_ref: (N, N) f32 VMEM scratch, S[i, j] carried across the chunk grid axis.
    L, N = r_ref.shape
    c = pl.program_id(2)

    @pl.when(c == 0)
    def _():
        state_ref[...] = jnp.zeros_like(state_ref)

    lw = lw_ref[...]                                              # (1, N) = log(decay)
    r = r_ref[...]
    k = k_ref[...]
    v = v_ref[...]

    t = lax.broadcasted_iota(jnp.int32, (L, 1), 0).astype(jnp.float32)   # (L, 1): 0..L-1
    half = jnp.float32((L - 1) * 0.5)                             # center exponents -> bounded

    w_t = jnp.exp(t * lw)                                         # w^t            (<= 1)
    rq = r * jnp.exp((t - half) * lw)                             # r_t * w^(t-half)
    kq = k * jnp.exp((half - 1.0 - t) * lw)                       # k_s * w^(half-1-s)
    kw = k * jnp.exp((jnp.float32(L - 1) - t) * lw)               # k_s * w^(L-1-s) (<= 1)

    # cross-chunk contribution: (L, N) x (N, N)
    y = jnp.dot(r * w_t, state_ref[...], preferred_element_type=jnp.float32)

    # intra-chunk: A[t, s] = sum_i r_t[i] k_s[i] w[i]^(t-1-s), strictly lower triangular
    a = lax.dot_general(rq, kq, (((1,), (1,)), ((), ())),
                        preferred_element_type=jnp.float32)       # (L, L)
    row = lax.broadcasted_iota(jnp.int32, (L, L), 0)
    col = lax.broadcasted_iota(jnp.int32, (L, L), 1)
    a = jnp.where(col < row, a, 0.0)
    y = y + jnp.dot(a, v, preferred_element_type=jnp.float32)     # (L, L) x (L, N)

    # current-timestep bonus term: (r_t . (u * k_t)) * v_t  (lane reduction, no (N,N) matmul)
    d = jnp.sum(r * u_ref[...] * k, axis=1, keepdims=True)        # (L, 1)
    o_ref[...] = (y + d * v).astype(o_ref.dtype)

    # state update: S <- w^L * S + sum_s w^(L-1-s) k_s v_s^T   (single (N,L)x(L,N) matmul)
    s_new = lax.dot_general(kw, v, (((0,), (0,)), ((), ())),
                            preferred_element_type=jnp.float32)   # (N, N)
    decay_col = jnp.transpose(jnp.exp(jnp.float32(L) * lw))       # (N, 1)
    state_ref[...] = decay_col * state_ref[...] + s_new


def wkv5_pallas(r, k, v, lw, u):
    """r,k,v: (B, H, T, N) f32; lw,u: (H, 1, N) f32 -> (B, H, T, N) f32."""
    B, H, T, N = r.shape
    L = min(WKV_CHUNK, T)
    Tp = _round_up(T, L)
    if Tp != T:
        pad = ((0, 0), (0, 0), (0, Tp - T), (0, 0))
        r, k, v = jnp.pad(r, pad), jnp.pad(k, pad), jnp.pad(v, pad)
    NC = Tp // L

    rkv_spec = pl.BlockSpec((None, None, L, N), lambda b, h, c: (b, h, c, 0))
    wu_spec = pl.BlockSpec((None, 1, N), lambda b, h, c: (h, 0, 0))
    out = pl.pallas_call(
        _wkv5_chunk_kernel,
        out_shape=jax.ShapeDtypeStruct((B, H, Tp, N), jnp.float32),
        grid=(B, H, NC),
        in_specs=[rkv_spec, rkv_spec, rkv_spec, wu_spec, wu_spec],
        out_specs=pl.BlockSpec((None, None, L, N), lambda b, h, c: (b, h, c, 0)),
        scratch_shapes=[pltpu.VMEM((N, N), jnp.float32)],
        compiler_params=pltpu.CompilerParams(
            dimension_semantics=("parallel", "parallel", "arbitrary")),
        cost_estimate=pl.CostEstimate(
            flops=2 * B * H * Tp * N * (2 * N + 2 * L),
            transcendentals=5 * B * H * Tp * N,
            bytes_accessed=4 * B * H * Tp * N * 4),
    )(r, k, v, lw, u)
    return out[:, :, :T, :] if Tp != T else out


# ----------------------------------------------------------------------------- #
# Pure-JAX reference recurrence (used as a self-check of the chunked kernel)
# ----------------------------------------------------------------------------- #
def wkv5_reference(r, k, v, lw, u):
    B, H, T, N = r.shape
    w = jnp.exp(lw)[:, 0, :]      # (H, N)
    u2 = u[:, 0, :]               # (H, N)

    def head_fn(rh, kh, vh, wh, uh):
        def step(S, inp):
            rt, kt, vt = inp
            at = kt[:, None] * vt[None, :]
            y = (rt * uh) @ at + rt @ S
            return wh[:, None] * S + at, y
        _, ys = lax.scan(step, jnp.zeros((N, N), jnp.float32), (rh, kh, vh))
        return ys

    f = jax.vmap(jax.vmap(head_fn), in_axes=(0, 0, 0, None, None))
    return f(r, k, v, w, u2)


# ----------------------------------------------------------------------------- #
# Plain-JAX glue (norms, shifts, activations)
# ----------------------------------------------------------------------------- #
def layer_norm(x, w, b, eps=1e-5):
    mu = jnp.mean(x, axis=-1, keepdims=True)
    var = jnp.mean(jnp.square(x - mu), axis=-1, keepdims=True)
    return (x - mu) / jnp.sqrt(var + eps) * w + b


def group_norm(x, num_groups, w, b, eps):
    BT, C = x.shape
    xg = x.reshape(BT, num_groups, C // num_groups)
    mu = jnp.mean(xg, axis=-1, keepdims=True)
    var = jnp.mean(jnp.square(xg - mu), axis=-1, keepdims=True)
    xg = (xg - mu) / jnp.sqrt(var + eps)
    return xg.reshape(BT, C) * w + b


def time_shift(x):
    # nn.ZeroPad2d((0, 0, 1, -1)): shift along T, zero at t=0
    return jnp.pad(x, ((0, 0), (1, 0), (0, 0)))[:, :-1, :]


# ----------------------------------------------------------------------------- #
# RWKV5 block pieces
# ----------------------------------------------------------------------------- #
def time_mixing(x, p, H, N):
    B, T, C = x.shape
    dim_att = H * N
    xx = time_shift(x)
    x2d, xx2d = x.reshape(B * T, C), xx.reshape(B * T, C)

    # fused: 4 lerp-mixes + 4 projections in one pallas_call -> (4, BT, dim_att)
    proj = mixproj_pallas(x2d, xx2d, p['mix_rkvg'], p['w_rkvg'])
    r2, k2, v2, g2 = proj[0], proj[1], proj[2], proj[3]
    g = jax.nn.silu(g2)

    to_bhtn = lambda z: z.reshape(B, T, H, N).transpose(0, 2, 1, 3)   # (B, H, T, N)
    y = wkv5_pallas(to_bhtn(r2), to_bhtn(k2), to_bhtn(v2), p['lw'], p['u'])
    y = y.transpose(0, 2, 1, 3).reshape(B * T, dim_att)

    # ln_x = nn.GroupNorm(n_head, dim_att, eps=1e-5 * head_size_divisor**2), divisor=8
    y = group_norm(y, H, p['ln_x_w'], p['ln_x_b'], eps=1e-5 * 64.0)
    y = y * g
    out = matmul_pallas(y, p['Wo'])
    return out.reshape(B, T, C)


def channel_mixing(x, p):
    B, T, C = x.shape
    xx = time_shift(x)
    x2d, xx2d = x.reshape(B * T, C), xx.reshape(B * T, C)
    k = mixproj_pallas(x2d, xx2d, p['mix_k'], p['Wk'][None])[0]       # (BT, dim_ffn)
    k = jnp.square(jax.nn.relu(k))
    kv = matmul_pallas(k, p['Wv'])                                    # (BT, C)
    r = jax.nn.sigmoid(mixproj_pallas(x2d, xx2d, p['mix_r'], p['Wr'][None])[0])
    return (r * kv).reshape(B, T, C)


def rwkv5_forward(params, idx, H, N):
    B, T = idx.shape
    x = params['emb'][idx]                                            # embedding gather (glue)
    for i, blk in enumerate(params['blocks']):
        if i == 0:
            x = layer_norm(x, blk['ln0_w'], blk['ln0_b'])
        x = x + time_mixing(layer_norm(x, blk['ln1_w'], blk['ln1_b']), blk['att'], H, N)
        x = x + channel_mixing(layer_norm(x, blk['ln2_w'], blk['ln2_b']), blk['ffn'])
    x = layer_norm(x, params['ln_out_w'], params['ln_out_b'])
    Bc, Tc, C = x.shape
    logits = matmul_pallas(x.reshape(Bc * Tc, C), params['head'])
    return logits.reshape(Bc, Tc, -1)


# ----------------------------------------------------------------------------- #
# Deterministic parameter construction (synthetic weights; no checkpoint load)
# Weights are stored pre-transposed (in, out) and in bf16 for MXU use; decays in log space.
# ----------------------------------------------------------------------------- #
def init_params(key, vocab_size, n_embd, n_layer, head_size):
    C = n_embd
    H = C // head_size
    N = head_size
    dim_att = C
    dim_ffn = int((C * 3.5) // 32 * 32)
    keys = iter(jax.random.split(key, 1024))
    wdt = jnp.bfloat16

    def nrm(shape, scale=0.02):
        return jax.random.normal(next(keys), shape, jnp.float32) * scale

    def uni(shape):
        return jax.random.uniform(next(keys), shape, jnp.float32)

    params = {
        'emb': nrm((vocab_size, C), 0.1),
        'ln_out_w': jnp.ones((C,), jnp.float32), 'ln_out_b': jnp.zeros((C,), jnp.float32),
        'head': nrm((C, vocab_size), 0.05).astype(wdt),
        'blocks': [],
    }
    for i in range(n_layer):
        time_decay = nrm((H, N), 1.0) - 5.0                      # w = exp(-exp(.)) in (0,1)
        blk = {
            'ln1_w': jnp.ones((C,), jnp.float32), 'ln1_b': jnp.zeros((C,), jnp.float32),
            'ln2_w': jnp.ones((C,), jnp.float32), 'ln2_b': jnp.zeros((C,), jnp.float32),
            'att': {
                'mix_rkvg': uni((4, C)),                         # rows: r, k, v, g lerp coeffs
                'w_rkvg': nrm((4, C, dim_att)).astype(wdt),      # fused Wr|Wk|Wv|Wg, (in,out)
                'lw': (-jnp.exp(time_decay)).reshape(H, 1, N),   # log(decay), f32
                'u': nrm((H, N), 0.5).reshape(H, 1, N),          # time_faaaa, f32
                'Wo': nrm((dim_att, C)).astype(wdt),
                'ln_x_w': jnp.ones((dim_att,), jnp.float32),
                'ln_x_b': jnp.zeros((dim_att,), jnp.float32),
            },
            'ffn': {
                'mix_k': uni((1, C)), 'mix_r': uni((1, C)),
                'Wk': nrm((C, dim_ffn)).astype(wdt),
                'Wr': nrm((C, C)).astype(wdt),
                'Wv': nrm((dim_ffn, C)).astype(wdt),
            },
        }
        if i == 0:
            blk['ln0_w'] = jnp.ones((C,), jnp.float32)
            blk['ln0_b'] = jnp.zeros((C,), jnp.float32)
        params['blocks'].append(blk)
    return params, H, N


# TODO(synk): gradient checkpointing (deepspeed / torch_checkpoint) is a training-time memory
#             optimization with no effect on forward semantics; omitted.
# TODO(synk): head packing to a 128-wide lane axis and a fully transpose-free (B,T,H,N) WKV
#             BlockSpec are further wins not applied here to stay within TPU tiling rules.

if __name__ == "__main__":
    # small config: vocab=64, n_embd=32, n_layer=2, head_size=16 -> n_head=2, B=2, T=8
    vocab_size, n_embd, n_layer, head_size = 64, 32, 2, 16
    B, T = 2, 8

    key = jax.random.PRNGKey(0)
    k_idx, k_param, k_chk = jax.random.split(key, 3)

    # --- standalone check: chunked WKV kernel vs. per-timestep reference recurrence ---
    Bc, Hc, Tc, Nc = 2, 2, 64, 16
    kk = jax.random.split(k_chk, 5)
    r_c = jax.random.normal(kk[0], (Bc, Hc, Tc, Nc), jnp.float32)
    k_c = jax.random.normal(kk[1], (Bc, Hc, Tc, Nc), jnp.float32)
    v_c = jax.random.normal(kk[2], (Bc, Hc, Tc, Nc), jnp.float32)
    lw_c = -jnp.exp(jax.random.normal(kk[3], (Hc, 1, Nc), jnp.float32) * 0.3 - 1.5)
    u_c = jax.random.normal(kk[4], (Hc, 1, Nc), jnp.float32) * 0.5
    y_pl = wkv5_pallas(r_c, k_c, v_c, lw_c, u_c)
    y_ref = wkv5_reference(r_c, k_c, v_c, lw_c, u_c)
    assert bool(jnp.allclose(y_pl, y_ref, rtol=2e-3, atol=2e-3)), \
        float(jnp.max(jnp.abs(y_pl - y_ref)))

    # --- full model forward ---
    idx = jax.random.randint(k_idx, (B, T), 0, vocab_size, dtype=jnp.int32)
    params, H, N = init_params(k_param, vocab_size, n_embd, n_layer, head_size)
    logits = rwkv5_forward(params, idx, H, N)
    jax.block_until_ready(logits)
    assert logits.shape == (B, T, vocab_size)
    assert bool(jnp.all(jnp.isfinite(logits)))
    print("KERNEL_OK")
</pallas_src>

<mosaic_0001>
module attributes {stable_mosaic.version = 11 : i64} {
  func.func @_wkv5_chunk_kernel(%arg0: i32, %arg1: i32, %arg2: i32, %arg3: memref<1x1x32x16xf32, #tpu.memory_space<vmem>>, %arg4: memref<1x1x32x16xf32, #tpu.memory_space<vmem>>, %arg5: memref<1x1x32x16xf32, #tpu.memory_space<vmem>>, %arg6: memref<1x1x16xf32, #tpu.memory_space<vmem>>, %arg7: memref<1x1x16xf32, #tpu.memory_space<vmem>>, %arg8: memref<1x1x32x16xf32, #tpu.memory_space<vmem>>, %arg9: memref<16x16xf32, #tpu.memory_space<vmem>>) attributes {dimension_semantics = [#tpu.dimension_semantics<parallel>, #tpu.dimension_semantics<parallel>, #tpu.dimension_semantics<arbitrary>], iteration_bounds = array<i64: 2, 2, 2>, scalar_prefetch = 0 : i64, scratch_operands = 1 : i64, tpu.core_type = #tpu.core_type<tc>, window_params = [{transform_indices = @transform_0, window_bounds = array<i64: 1, 1, 32, 16>}, {transform_indices = @transform_1, window_bounds = array<i64: 1, 1, 32, 16>}, {transform_indices = @transform_2, window_bounds = array<i64: 1, 1, 32, 16>}, {transform_indices = @transform_3, window_bounds = array<i64: 1, 1, 16>}, {transform_indices = @transform_4, window_bounds = array<i64: 1, 1, 16>}, {transform_indices = @transform_5, window_bounds = array<i64: 1, 1, 32, 16>}]} {
    %c0_i32 = arith.constant 0 : i32
    %0 = arith.cmpi eq, %arg2, %c0_i32 : i32
    %1 = arith.extui %0 : i1 to i32
    %c0_i32_0 = arith.constant 0 : i32
    %2 = arith.cmpi ne, %1, %c0_i32_0 : i32
    scf.if %2 {
      %cst_38 = arith.constant 0.000000e+00 : f32
      %73 = vector.broadcast %cst_38 : f32 to vector<16x16xf32>
      %c0_39 = arith.constant 0 : index
      %c0_40 = arith.constant 0 : index
      %74 = vector.load %arg9[%c0_39, %c0_40] : memref<16x16xf32, #tpu.memory_space<vmem>>, vector<16x16xf32>
      tpu.vector_store %arg9[%c0_39, %c0_40], %73 {strides = array<i32>} : memref<16x16xf32, #tpu.memory_space<vmem>>, vector<16x16xf32>,
    } else {
    }
    %c0 = arith.constant 0 : index
    %c0_1 = arith.constant 0 : index
    %c0_2 = arith.constant 0 : index
    %3 = vector.load %arg6[%c0, %c0_1, %c0_2] : memref<1x1x16xf32, #tpu.memory_space<vmem>>, vector<1x1x16xf32>
    %4 = vector.shape_cast %3 : vector<1x1x16xf32> to vector<1x16xf32>
    %c0_3 = arith.constant 0 : index
    %c0_4 = arith.constant 0 : index
    %c0_5 = arith.constant 0 : index
    %c0_6 = arith.constant 0 : index
    %5 = vector.load %arg3[%c0_3, %c0_4, %c0_5, %c0_6] : memref<1x1x32x16xf32, #tpu.memory_space<vmem>>, vector<1x1x32x16xf32>
    %6 = vector.shape_cast %5 : vector<1x1x32x16xf32> to vector<32x16xf32>
    %c0_7 = arith.constant 0 : index
    %c0_8 = arith.constant 0 : index
    %c0_9 = arith.constant 0 : index
    %c0_10 = arith.constant 0 : index
    %7 = vector.load %arg4[%c0_7, %c0_8, %c0_9, %c0_10] : memref<1x1x32x16xf32, #tpu.memory_space<vmem>>, vector<1x1x32x16xf32>
    %8 = vector.shape_cast %7 : vector<1x1x32x16xf32> to vector<32x16xf32>
    %c0_11 = arith.constant 0 : index
    %c0_12 = arith.constant 0 : index
    %c0_13 = arith.constant 0 : index
    %c0_14 = arith.constant 0 : index
    %9 = vector.load %arg5[%c0_11, %c0_12, %c0_13, %c0_14] : memref<1x1x32x16xf32, #tpu.memory_space<vmem>>, vector<1x1x32x16xf32>
    %10 = vector.shape_cast %9 : vector<1x1x32x16xf32> to vector<32x16xf32>
    %11 = tpu.iota {dimensions = array<i32: 0>} : vector<32x1xi32>
    %12 = arith.sitofp %11 : vector<32x1xi32> to vector<32x1xf32>
    %13 = vector.broadcast %12 : vector<32x1xf32> to vector<32x16xf32>
    %14 = vector.broadcast %4 : vector<1x16xf32> to vector<32x16xf32>
    %15 = arith.mulf %13, %14 : vector<32x16xf32>
    %16 = math.exp %15 : vector<32x16xf32>
    %cst = arith.constant 1.550000e+01 : f32
    %17 = vector.broadcast %cst : f32 to vector<32x1xf32>
    %18 = arith.subf %12, %17 : vector<32x1xf32>
    %19 = vector.broadcast %18 : vector<32x1xf32> to vector<32x16xf32>
    %20 = vector.broadcast %4 : vector<1x16xf32> to vector<32x16xf32>
    %21 = arith.mulf %19, %20 : vector<32x16xf32>
    %22 = math.exp %21 : vector<32x16xf32>
    %23 = arith.mulf %6, %22 : vector<32x16xf32>
    %cst_15 = arith.constant 1.550000e+01 : f32
    %cst_16 = arith.constant 1.000000e+00 : f32
    %24 = arith.subf %cst_15, %cst_16 : f32
    %25 = vector.broadcast %24 : f32 to vector<32x1xf32>
    %26 = arith.subf %25, %12 : vector<32x1xf32>
    %27 = vector.broadcast %26 : vector<32x1xf32> to vector<32x16xf32>
    %28 = vector.broadcast %4 : vector<1x16xf32> to vector<32x16xf32>
    %29 = arith.mulf %27, %28 : vector<32x16xf32>
    %30 = math.exp %29 : vector<32x16xf32>
    %31 = arith.mulf %8, %30 : vector<32x16xf32>
    %cst_17 = arith.constant 3.100000e+01 : f32
    %32 = vector.broadcast %cst_17 : f32 to vector<32x1xf32>
    %33 = arith.subf %32, %12 : vector<32x1xf32>
    %34 = vector.broadcast %33 : vector<32x1xf32> to vector<32x16xf32>
    %35 = vector.broadcast %4 : vector<1x16xf32> to vector<32x16xf32>
    %36 = arith.mulf %34, %35 : vector<32x16xf32>
    %37 = math.exp %36 : vector<32x16xf32>
    %38 = arith.mulf %8, %37 : vector<32x16xf32>
    %39 = arith.mulf %6, %16 : vector<32x16xf32>
    %c0_18 = arith.constant 0 : index
    %c0_19 = arith.constant 0 : index
    %40 = vector.load %arg9[%c0_18, %c0_19] : memref<16x16xf32, #tpu.memory_space<vmem>>, vector<16x16xf32>
    %cst_20 = arith.constant dense<0.000000e+00> : vector<32x16xf32>
    %41 = tpu.matmul %39, %40, %cst_20 {dimension_numbers = #tpu.dot_dimension_numbers<[1], [0], [0], [1], [0, 0, 1, 1], [], []>} : vector<32x16xf32>, vector<16x16xf32>, vector<32x16xf32> -> vector<32x16xf32>
    %cst_21 = arith.constant dense<0.000000e+00> : vector<32x32xf32>
    %42 = tpu.matmul %23, %31, %cst_21 {dimension_numbers = #tpu.dot_dimension_numbers<[1], [1], [0], [0], [0, 0, 1, 0], [], []>} : vector<32x16xf32>, vector<32x16xf32>, vector<32x32xf32> -> vector<32x32xf32>
    %43 = tpu.iota {dimensions = array<i32: 0>} : vector<32x32xi32>
    %44 = tpu.iota {dimensions = array<i32: 1>} : vector<32x32xi32>
    %45 = arith.cmpi slt, %44, %43 : vector<32x32xi32>
    %cst_22 = arith.constant 0.000000e+00 : f32
    %46 = vector.broadcast %cst_22 : f32 to vector<32x32xf32>
    %47 = arith.select %45, %42, %46 : vector<32x32xi1>, vector<32x32xf32>
    %cst_23 = arith.constant dense<0.000000e+00> : vector<32x16xf32>
    %48 = tpu.matmul %47, %10, %cst_23 {dimension_numbers = #tpu.dot_dimension_numbers<[1], [0], [0], [1], [0, 0, 1, 1], [], []>} : vector<32x32xf32>, vector<32x16xf32>, vector<32x16xf32> -> vector<32x16xf32>
    %49 = arith.addf %41, %48 : vector<32x16xf32>
    %c0_24 = arith.constant 0 : index
    %c0_25 = arith.constant 0 : index
    %c0_26 = arith.constant 0 : index
    %50 = vector.load %arg7[%c0_24, %c0_25, %c0_26] : memref<1x1x16xf32, #tpu.memory_space<vmem>>, vector<1x1x16xf32>
    %51 = vector.shape_cast %50 : vector<1x1x16xf32> to vector<1x16xf32>
    %52 = vector.broadcast %51 : vector<1x16xf32> to vector<32x16xf32>
    %53 = arith.mulf %6, %52 : vector<32x16xf32>
    %54 = arith.mulf %53, %8 : vector<32x16xf32>
    %cst_27 = arith.constant dense<0.000000e+00> : vector<32xf32>
    %55 = vector.multi_reduction <add>, %54, %cst_27 [1] : vector<32x16xf32> to vector<32xf32>
    %56 = vector.shape_cast %55 : vector<32xf32> to vector<32x1xf32>
    %57 = vector.broadcast %56 : vector<32x1xf32> to vector<32x16xf32>
    %58 = arith.mulf %57, %10 : vector<32x16xf32>
    %59 = arith.addf %49, %58 : vector<32x16xf32>
    %c0_28 = arith.constant 0 : index
    %c0_29 = arith.constant 0 : index
    %c0_30 = arith.constant 0 : index
    %c0_31 = arith.constant 0 : index
    %60 = vector.load %arg8[%c0_28, %c0_29, %c0_30, %c0_31] : memref<1x1x32x16xf32, #tpu.memory_space<vmem>>, vector<1x1x32x16xf32>
    %61 = vector.shape_cast %60 : vector<1x1x32x16xf32> to vector<32x16xf32>
    %62 = vector.shape_cast %59 : vector<32x16xf32> to vector<1x1x32x16xf32>
    tpu.vector_store %arg8[%c0_28, %c0_29, %c0_30, %c0_31], %62 {strides = array<i32>} : memref<1x1x32x16xf32, #tpu.memory_space<vmem>>, vector<1x1x32x16xf32>,
    %cst_32 = arith.constant dense<0.000000e+00> : vector<16x16xf32>
    %63 = tpu.matmul %38, %10, %cst_32 {dimension_numbers = #tpu.dot_dimension_numbers<[0], [0], [1], [1], [0, 1, 1, 1], [], []>} : vector<32x16xf32>, vector<32x16xf32>, vector<16x16xf32> -> vector<16x16xf32>
    %cst_33 = arith.constant 3.200000e+01 : f32
    %64 = vector.broadcast %cst_33 : f32 to vector<1x16xf32>
    %65 = arith.mulf %64, %4 : vector<1x16xf32>
    %66 = math.exp %65 : vector<1x16xf32>
    %67 = tpu.transpose %66, [1, 0] : vector<1x16xf32> -> vector<16x1xf32>
    %c0_34 = arith.constant 0 : index
    %c0_35 = arith.constant 0 : index
    %68 = vector.load %arg9[%c0_34, %c0_35] : memref<16x16xf32, #tpu.memory_space<vmem>>, vector<16x16xf32>
    %69 = vector.broadcast %67 : vector<16x1xf32> to vector<16x16xf32>
    %70 = arith.mulf %69, %68 : vector<16x16xf32>
    %71 = arith.addf %70, %63 : vector<16x16xf32>
    %c0_36 = arith.constant 0 : index
    %c0_37 = arith.constant 0 : index
    %72 = vector.load %arg9[%c0_36, %c0_37] : memref<16x16xf32, #tpu.memory_space<vmem>>, vector<16x16xf32>
    tpu.vector_store %arg9[%c0_36, %c0_37], %71 {strides = array<i32>} : memref<16x16xf32, #tpu.memory_space<vmem>>, vector<16x16xf32>,
    return
  }
  func.func @transform_0(%arg0: i32, %arg1: i32, %arg2: i32) -> (i32, i32, i32, i32) {
    %c0_i32 = arith.constant 0 : i32
    %c0_i32_0 = arith.constant 0 : i32
    return %arg0, %arg1, %arg2, %c0_i32 : i32, i32, i32, i32
  }
  func.func @transform_1(%arg0: i32, %arg1: i32, %arg2: i32) -> (i32, i32, i32, i32) {
    %c0_i32 = arith.constant 0 : i32
    %c0_i32_0 = arith.constant 0 : i32
    return %arg0, %arg1, %arg2, %c0_i32 : i32, i32, i32, i32
  }
  func.func @transform_2(%arg0: i32, %arg1: i32, %arg2: i32) -> (i32, i32, i32, i32) {
    %c0_i32 = arith.constant 0 : i32
    %c0_i32_0 = arith.constant 0 : i32
    return %arg0, %arg1, %arg2, %c0_i32 : i32, i32, i32, i32
  }
  func.func @transform_3(%arg0: i32, %arg1: i32, %arg2: i32) -> (i32, i32, i32) {
    %c0_i32 = arith.constant 0 : i32
    %c0_i32_0 = arith.constant 0 : i32
    %c0_i32_1 = arith.constant 0 : i32
    return %arg1, %c0_i32, %c0_i32_0 : i32, i32, i32
  }
  func.func @transform_4(%arg0: i32, %arg1: i32, %arg2: i32) -> (i32, i32, i32) {
    %c0_i32 = arith.constant 0 : i32
    %c0_i32_0 = arith.constant 0 : i32
    %c0_i32_1 = arith.constant 0 : i32
    return %arg1, %c0_i32, %c0_i32_0 : i32, i32, i32
  }
  func.func @transform_5(%arg0: i32, %arg1: i32, %arg2: i32) -> (i32, i32, i32, i32) {
    %c0_i32 = arith.constant 0 : i32
    %c0_i32_0 = arith.constant 0 : i32
    return %arg0, %arg1, %arg2, %c0_i32 : i32, i32, i32, i32
  }
}

</mosaic_0001>

<llo_original>
// kernel: tpu_custom_call.1
$region0: #{tpu_custom_call.1}
  #allocation0 [shape = 'u32[]', space=smem, size = 0x4, offset = 0x4, fixed_abs, tag = 'smem constant byte address 0x4 - core index']
  #allocation1 [shape = 'u32[144,128]{1,0:T(1,128)}', space=vmem, size = 0x12000, scoped, tag = 'internal scratch']
  #allocation2 [shape = 'f32[16,16]{1,0:T(8,128)}', space=vmem, size = 0x2000, scoped, tag = 'scratch operand']
  %s0 = inlined_call_operand.vmem [shape: f32[2,2,64,16], index: 0, kind: input, shape index: {}]
  %s1 = inlined_call_operand.vmem [shape: f32[2,2,64,16], index: 1, kind: input, shape index: {}]
  %s2 = inlined_call_operand.vmem [shape: f32[2,2,64,16], index: 2, kind: input, shape index: {}]
  %s3 = inlined_call_operand.vmem [shape: f32[2,1,16], index: 3, kind: input, shape index: {}]
  %s4 = inlined_call_operand.vmem [shape: f32[2,1,16], index: 4, kind: input, shape index: {}]
  %s5 = inlined_call_operand.vmem [shape: f32[2,2,64,16], index: 5, kind: output, shape index: {}]
  %s6 = sld [smem:[#allocation0]]
  $region57: #{tpu_custom_call.1} parent=0
    _
  %s8 = ssub.s32 1, %s6
  %s9 = scalar_select 0, %s8, %s6
  loop: start=0, step=1, limit=10
  $region2: #{tpu_custom_call.1} parent=0 // loop_pre_header
    _
  $region3: #{tpu_custom_call.1} parent=0 // loop_header
    %s11 = sphi 0, %s15
    %p12 = scmp.ge.s32.totalorder %s11, 10
    %s18 = sphi 0, %s37
    %s19 = sphi 0, %s33
    %s20 = sphi 0, %s29
    %s21 = sphi 0, %s18
    %s22 = sphi 0, %s19
    %s23 = sphi 0, %s20
    %s24 = sphi 0, %s21
    %s25 = sphi 0, %s22
    %s26 = sphi 0, %s23
    %s44 = sphi 0, %s46
    %s47 = sphi 0, %s44
    %s48 = sphi 0, %s47
    %s64 = sphi 0, %s48
    %s74 = sphi 0, %s76
    %s77 = sphi 0, %s74
    %s78 = sphi 0, %s77
    %s94 = sphi 0, %s78
    %s104 = sphi 0, %s106
    %s107 = sphi 0, %s104
    %s108 = sphi 0, %s107
    %s124 = sphi 0, %s108
    %s130 = sphi 0, %s132
    %s133 = sphi 0, %s130
    %s134 = sphi 0, %s133
    %s150 = sphi 0, %s134
    %s156 = sphi 0, %s158
    %s159 = sphi 0, %s156
    %s160 = sphi 0, %s159
    %s176 = sphi 0, %s160
    %s186 = sphi 0, %s188
    %s189 = sphi 0, %s186
    %s190 = sphi 0, %s189
    %s206 = sphi 0, %s190
  $region4: #{tpu_custom_call.1} parent=0 // loop_header_branch
    %14 = sbr.rel (%p12) target = $region8
  $region5: #{tpu_custom_call.1} parent=0 // loop_body
    %s16 = ssub.s32 %s11, 1
    %s17 = ssub.s32 %s11, 2
    %s27 = sadd.s32 1, %s20
    %p28 = scmp.ge.s32.totalorder %s27, 2
    %s29 = scalar_select %p28, 0, %s27
    %s30 = sadd.s32 1, %s19
    %s31 = scalar_select %p28, %s30, %s19
    %p32 = scmp.ge.s32.totalorder %s31, 2
    %s33 = scalar_select %p32, 0, %s31
    %s34 = sadd.s32 1, %s18
    %s35 = scalar_select %p32, %s34, %s18
    %p36 = scmp.ge.s32.totalorder %s35, 2
    %s37 = scalar_select %p36, 0, %s35
    %s38 = ssub.s32 %s18, %s37
    %s39 = ssub.s32 %s19, %s33
    %s40 = sor.u32 %s38, %s39
    %s41 = ssub.s32 %s20, %s29
    %s42 = sor.u32 %s40, %s41
    %p43 = scmp.eq.s32.totalorder %s42, 0
    %s45 = sadd.s32 %s44, 1
    %s46 = scalar_select %p43, %s44, %s45
    %p49 = pneg %p43
    %p50 = scmp.eq.s32.totalorder %s11, 7
    %p51 = por %p49, %p50
    %p52 = scmp.ne.s32.totalorder %s44, %s47
    %p53 = scmp.eq.s32.totalorder %s11, 0
    %p54 = por %p52, %p53
    %p55 = scmp.ne.s32.totalorder %s44, %s47
    %p56 = scmp.eq.s32.totalorder %s16, 7
    %p57 = por %p55, %p56
    %p58 = scmp.ne.s32.totalorder %s47, %s48
    %p59 = scmp.eq.s32.totalorder %s16, 0
    %p60 = por %p58, %p59
    %p61 = scmp.ne.s32.totalorder %s47, %s48
    %p62 = scmp.eq.s32.totalorder %s17, 7
    %p63 = por %p61, %p62
    %p65 = scmp.ne.s32.totalorder %s48, %s64
    %p66 = scmp.eq.s32.totalorder %s17, 0
    %p67 = por %p65, %p66
    %s68 = ssub.s32 %s18, %s37
    %s69 = ssub.s32 %s19, %s33
    %s70 = sor.u32 %s68, %s69
    %s71 = ssub.s32 %s20, %s29
    %s72 = sor.u32 %s70, %s71
    %p73 = scmp.eq.s32.totalorder %s72, 0
    %s75 = sadd.s32 %s74, 1
    %s76 = scalar_select %p73, %s74, %s75
    %p79 = pneg %p73
    %p80 = scmp.eq.s32.totalorder %s11, 7
    %p81 = por %p79, %p80
    %p82 = scmp.ne.s32.totalorder %s74, %s77
    %p83 = scmp.eq.s32.totalorder %s11, 0
    %p84 = por %p82, %p83
    %p85 = scmp.ne.s32.totalorder %s74, %s77
    %p86 = scmp.eq.s32.totalorder %s16, 7
    %p87 = por %p85, %p86
    %p88 = scmp.ne.s32.totalorder %s77, %s78
    %p89 = scmp.eq.s32.totalorder %s16, 0
    %p90 = por %p88, %p89
    %p91 = scmp.ne.s32.totalorder %s77, %s78
    %p92 = scmp.eq.s32.totalorder %s17, 7
    %p93 = por %p91, %p92
    %p95 = scmp.ne.s32.totalorder %s78, %s94
    %p96 = scmp.eq.s32.totalorder %s17, 0
    %p97 = por %p95, %p96
    %s98 = ssub.s32 %s18, %s37
    %s99 = ssub.s32 %s19, %s33
    %s100 = sor.u32 %s98, %s99
    %s101 = ssub.s32 %s20, %s29
    %s102 = sor.u32 %s100, %s101
    %p103 = scmp.eq.s32.totalorder %s102, 0
    %s105 = sadd.s32 %s104, 1
    %s106 = scalar_select %p103, %s104, %s105
    %p109 = pneg %p103
    %p110 = scmp.eq.s32.totalorder %s11, 7
    %p111 = por %p109, %p110
    %p112 = scmp.ne.s32.totalorder %s104, %s107
    %p113 = scmp.eq.s32.totalorder %s11, 0
    %p114 = por %p112, %p113
    %p115 = scmp.ne.s32.totalorder %s104, %s107
    %p116 = scmp.eq.s32.totalorder %s16, 7
    %p117 = por %p115, %p116
    %p118 = scmp.ne.s32.totalorder %s107, %s108
    %p119 = scmp.eq.s32.totalorder %s16, 0
    %p120 = por %p118, %p119
    %p121 = scmp.ne.s32.totalorder %s107, %s108
    %p122 = scmp.eq.s32.totalorder %s17, 7
    %p123 = por %p121, %p122
    %p125 = scmp.ne.s32.totalorder %s108, %s124
    %p126 = scmp.eq.s32.totalorder %s17, 0
    %p127 = por %p125, %p126
    %s128 = ssub.s32 %s19, %s33
    %p129 = scmp.eq.s32.totalorder %s128, 0
    %s131 = sadd.s32 %s130, 1
    %s132 = scalar_select %p129, %s130, %s131
    %p135 = pneg %p129
    %p136 = scmp.eq.s32.totalorder %s11, 7
    %p137 = por %p135, %p136
    %p138 = scmp.ne.s32.totalorder %s130, %s133
    %p139 = scmp.eq.s32.totalorder %s11, 0
    %p140 = por %p138, %p139
    %p141 = scmp.ne.s32.totalorder %s130, %s133
    %p142 = scmp.eq.s32.totalorder %s16, 7
    %p143 = por %p141, %p142
    %p144 = scmp.ne.s32.totalorder %s133, %s134
    %p145 = scmp.eq.s32.totalorder %s16, 0
    %p146 = por %p144, %p145
    %p147 = scmp.ne.s32.totalorder %s133, %s134
    %p148 = scmp.eq.s32.totalorder %s17, 7
    %p149 = por %p147, %p148
    %p151 = scmp.ne.s32.totalorder %s134, %s150
    %p152 = scmp.eq.s32.totalorder %s17, 0
    %p153 = por %p151, %p152
    %s154 = ssub.s32 %s19, %s33
    %p155 = scmp.eq.s32.totalorder %s154, 0
    %s157 = sadd.s32 %s156, 1
    %s158 = scalar_select %p155, %s156, %s157
    %p161 = pneg %p155
    %p162 = scmp.eq.s32.totalorder %s11, 7
    %p163 = por %p161, %p162
    %p164 = scmp.ne.s32.totalorder %s156, %s159
    %p165 = scmp.eq.s32.totalorder %s11, 0
    %p166 = por %p164, %p165
    %p167 = scmp.ne.s32.totalorder %s156, %s159
    %p168 = scmp.eq.s32.totalorder %s16, 7
    %p169 = por %p167, %p168
    %p170 = scmp.ne.s32.totalorder %s159, %s160
    %p171 = scmp.eq.s32.totalorder %s16, 0
    %p172 = por %p170, %p171
    %p173 = scmp.ne.s32.totalorder %s159, %s160
    %p174 = scmp.eq.s32.totalorder %s17, 7
    %p175 = por %p173, %p174
    %p177 = scmp.ne.s32.totalorder %s160, %s176
    %p178 = scmp.eq.s32.totalorder %s17, 0
    %p179 = por %p177, %p178
    %s180 = ssub.s32 %s18, %s37
    %s181 = ssub.s32 %s19, %s33
    %s182 = sor.u32 %s180, %s181
    %s183 = ssub.s32 %s20, %s29
    %s184 = sor.u32 %s182, %s183
    %p185 = scmp.eq.s32.totalorder %s184, 0
    %s187 = sadd.s32 %s186, 1
    %s188 = scalar_select %p185, %s186, %s187
    %p191 = pneg %p185
    %p192 = scmp.eq.s32.totalorder %s11, 7
    %p193 = por %p191, %p192
    %p194 = scmp.ne.s32.totalorder %s186, %s189
    %p195 = scmp.eq.s32.totalorder %s11, 0
    %p196 = por %p194, %p195
    %p197 = scmp.ne.s32.totalorder %s186, %s189
    %p198 = scmp.eq.s32.totalorder %s16, 7
    %p199 = por %p197, %p198
    %p200 = scmp.ne.s32.totalorder %s189, %s190
    %p201 = scmp.eq.s32.totalorder %s16, 0
    %p202 = por %p200, %p201
    %p203 = scmp.ne.s32.totalorder %s189, %s190
    %p204 = scmp.eq.s32.totalorder %s17, 7
    %p205 = por %p203, %p204
    %p207 = scmp.ne.s32.totalorder %s190, %s206
    %p208 = scmp.eq.s32.totalorder %s17, 0
    %p209 = por %p207, %p208
    %p210 = scmp.le.s32.totalorder 1, %s11
    %p211 = scmp.lt.s32.totalorder %s11, 9
    %p212 = pnand %p210, %p211
    %p213 = pneg %p212
    // Predicated region
    $region9: #{tpu_custom_call.1} parent=5 // pred_check
      _
    $region10: #{tpu_custom_call.1} parent=5 // pred_check_branch
      %215 = sbr.rel (%p212) target = $region12
    $region11: #{tpu_custom_call.1} parent=5 // pred_region
      %s216 = ssub.s32 %s11, 1
    $region12: #{tpu_custom_call.1} parent=5 // pred_fallthru
      _
    %p217 = scmp.lt.s32.totalorder %s11, 8
    // Predicated region
    $region13: #{tpu_custom_call.1} parent=5 // pred_check
      %p218 = pneg %p217
    $region14: #{tpu_custom_call.1} parent=5 // pred_check_branch
      %220 = sbr.rel (%p218) target = $region16
    $region15: #{tpu_custom_call.1} parent=5 // pred_region
      // Predicated region
      $region17: #{tpu_custom_call.1} parent=15 // pred_check
        %p221 = pneg %p54
      $region18: #{tpu_custom_call.1} parent=15 // pred_check_branch
        %223 = sbr.rel (%p221) target = $region20
      $region19: #{tpu_custom_call.1} parent=15 // pred_region
        %s224 = smul.u32 4, %s20
        %p225 = scmp.lt.s32.totalorder %s18, 1
        %s226 = scalar_select %p225, %s18, 1
        %p227 = scmp.lt.s32.totalorder %s19, 1
        %s228 = scalar_select %p227, %s19, 1
        %p229 = scmp.lt.s32.totalorder %s224, 7
        %s230 = scalar_select %p229, %s224, 7
        %s231 = smul.addr %s228, 8
        %s232 = sadd.s32 %s230, %s231
        %s233 = smul.addr %s226, 16
        %s234 = sadd.s32 %s232, %s233
        %s235 = smul.addr %s234, 8
        %s236 = scalar_lea.vmem %s0, %s235
        %s237 = smul.u32 4, %s20
      $region20: #{tpu_custom_call.1} parent=15 // pred_fallthru
        _
      // Predicated region
      $region21: #{tpu_custom_call.1} parent=15 // pred_check
        %p238 = pneg %p84
      $region22: #{tpu_custom_call.1} parent=15 // pred_check_branch
        %240 = sbr.rel (%p238) target = $region24
      $region23: #{tpu_custom_call.1} parent=15 // pred_region
        %s241 = smul.u32 4, %s20
        %p242 = scmp.lt.s32.totalorder %s18, 1
        %s243 = scalar_select %p242, %s18, 1
        %p244 = scmp.lt.s32.totalorder %s19, 1
        %s245 = scalar_select %p244, %s19, 1
        %p246 = scmp.lt.s32.totalorder %s241, 7
        %s247 = scalar_select %p246, %s241, 7
        %s248 = smul.addr %s245, 8
        %s249 = sadd.s32 %s247, %s248
        %s250 = smul.addr %s243, 16
        %s251 = sadd.s32 %s249, %s250
        %s252 = smul.addr %s251, 8
        %s253 = scalar_lea.vmem %s1, %s252
        %s254 = smul.u32 4, %s20
      $region24: #{tpu_custom_call.1} parent=15 // pred_fallthru
        _
      // Predicated region
      $region25: #{tpu_custom_call.1} parent=15 // pred_check
        %p255 = pneg %p114
      $region26: #{tpu_custom_call.1} parent=15 // pred_check_branch
        %257 = sbr.rel (%p255) target = $region28
      $region27: #{tpu_custom_call.1} parent=15 // pred_region
        %s258 = smul.u32 4, %s20
        %p259 = scmp.lt.s32.totalorder %s18, 1
        %s260 = scalar_select %p259, %s18, 1
        %p261 = scmp.lt.s32.totalorder %s19, 1
        %s262 = scalar_select %p261, %s19, 1
        %p263 = scmp.lt.s32.totalorder %s258, 7
        %s264 = scalar_select %p263, %s258, 7
        %s265 = smul.addr %s262, 8
        %s266 = sadd.s32 %s264, %s265
        %s267 = smul.addr %s260, 16
        %s268 = sadd.s32 %s266, %s267
        %s269 = smul.addr %s268, 8
        %s270 = scalar_lea.vmem %s2, %s269
        %s271 = smul.u32 4, %s20
      $region28: #{tpu_custom_call.1} parent=15 // pred_fallthru
        _
      // Predicated region
      $region29: #{tpu_custom_call.1} parent=15 // pred_check
        %p272 = pneg %p140
      $region30: #{tpu_custom_call.1} parent=15 // pred_check_branch
        %274 = sbr.rel (%p272) target = $region32
      $region31: #{tpu_custom_call.1} parent=15 // pred_region
        %p275 = scmp.lt.s32.totalorder %s19, 1
        %s276 = scalar_select %p275, %s19, 1
        %s277 = scalar_lea.vmem %s3, %s276
      $region32: #{tpu_custom_call.1} parent=15 // pred_fallthru
        _
      // Predicated region
      $region33: #{tpu_custom_call.1} parent=15 // pred_check
        %p278 = pneg %p166
      $region34: #{tpu_custom_call.1} parent=15 // pred_check_branch
        %280 = sbr.rel (%p278) target = $region36
      $region35: #{tpu_custom_call.1} parent=15 // pred_region
        %p281 = scmp.lt.s32.totalorder %s19, 1
        %s282 = scalar_select %p281, %s19, 1
        %s283 = scalar_lea.vmem %s4, %s282
      $region36: #{tpu_custom_call.1} parent=15 // pred_fallthru
        _
    $region16: #{tpu_custom_call.1} parent=5 // pred_fallthru
      _
    %p284 = scmp.le.s32.totalorder 1, %s11
    %p285 = scmp.lt.s32.totalorder %s11, 9
    %p286 = pnand %p284, %p285
    %p287 = pneg %p286
    // Predicated region
    $region37: #{tpu_custom_call.1} parent=5 // pred_check
      _
    $region38: #{tpu_custom_call.1} parent=5 // pred_check_branch
      %289 = sbr.rel (%p286) target = $region40
    $region39: #{tpu_custom_call.1} parent=5 // pred_region
      %s290 = ssub.s32 %s11, 1
      %s291 = smul.u32 4, %s23
      %p292 = scmp.lt.s32.totalorder %s21, 1
      %s293 = scalar_select %p292, %s21, 1
      %p294 = scmp.lt.s32.totalorder %s22, 1
      %s295 = scalar_select %p294, %s22, 1
      %p296 = scmp.lt.s32.totalorder %s291, 7
      %s297 = scalar_select %p296, %s291, 7
      %s298 = smul.addr %s295, 8
      %s299 = sadd.s32 %s297, %s298
      %s300 = smul.addr %s293, 16
      %s301 = sadd.s32 %s299, %s300
      %s302 = smul.addr %s301, 8
      %s303 = scalar_lea.vmem %s0, %s302
      %p304 = pneg %p60
      %p305 = pneg %p57
      %s306 = smul.u32 4, %s23
      %p307 = scmp.lt.s32.totalorder %s21, 1
      %s308 = scalar_select %p307, %s21, 1
      %p309 = scmp.lt.s32.totalorder %s22, 1
      %s310 = scalar_select %p309, %s22, 1
      %p311 = scmp.lt.s32.totalorder %s306, 7
      %s312 = scalar_select %p311, %s306, 7
      %s313 = smul.addr %s310, 8
      %s314 = sadd.s32 %s312, %s313
      %s315 = smul.addr %s308, 16
      %s316 = sadd.s32 %s314, %s315
      %s317 = smul.addr %s316, 8
      %s318 = scalar_lea.vmem %s1, %s317
      %p319 = pneg %p90
      %p320 = pneg %p87
      %s321 = smul.u32 4, %s23
      %p322 = scmp.lt.s32.totalorder %s21, 1
      %s323 = scalar_select %p322, %s21, 1
      %p324 = scmp.lt.s32.totalorder %s22, 1
      %s325 = scalar_select %p324, %s22, 1
      %p326 = scmp.lt.s32.totalorder %s321, 7
      %s327 = scalar_select %p326, %s321, 7
      %s328 = smul.addr %s325, 8
      %s329 = sadd.s32 %s327, %s328
      %s330 = smul.addr %s323, 16
      %s331 = sadd.s32 %s329, %s330
      %s332 = smul.addr %s331, 8
      %s333 = scalar_lea.vmem %s2, %s332
      %p334 = pneg %p120
      %p335 = pneg %p117
      %p336 = scmp.lt.s32.totalorder %s22, 1
      %s337 = scalar_select %p336, %s22, 1
      %s338 = scalar_lea.vmem %s3, %s337
      %p339 = pneg %p146
      %p340 = pneg %p143
      %p341 = scmp.lt.s32.totalorder %s22, 1
      %s342 = scalar_select %p341, %s22, 1
      %s343 = scalar_lea.vmem %s4, %s342
      %p344 = pneg %p172
      %p345 = pneg %p169
      %p346 = pneg %p202
      %p347 = pneg %p199
      %s348 = smul.u32 4, %s23
      %p349 = scmp.lt.s32.totalorder %s21, 1
      %s350 = scalar_select %p349, %s21, 1
      %p351 = scmp.lt.s32.totalorder %s22, 1
      %s352 = scalar_select %p351, %s22, 1
      %p353 = scmp.lt.s32.totalorder %s348, 7
      %s354 = scalar_select %p353, %s348, 7
      %s355 = smul.addr %s352, 8
      %s356 = sadd.s32 %s354, %s355
      %s357 = smul.addr %s350, 16
      %s358 = sadd.s32 %s356, %s357
      %s359 = smul.addr %s358, 8
      %s360 = scalar_lea.vmem %s5, %s359
      %s361 = smul.u32 4, %s23
      %p362 = scmp.lt.s32.totalorder %s21, 1
      %s363 = scalar_select %p362, %s21, 1
      %p364 = scmp.lt.s32.totalorder %s22, 1
      %s365 = scalar_select %p364, %s22, 1
      %p366 = scmp.lt.s32.totalorder %s361, 7
      %s367 = scalar_select %p366, %s361, 7
      %s368 = smul.addr %s365, 8
      %s369 = sadd.s32 %s367, %s368
      %s370 = smul.addr %s363, 16
      %s371 = sadd.s32 %s369, %s370
      %s372 = smul.addr %s371, 8
      %s373 = scalar_lea.vmem %s0, %s372
      %s374 = smul.u32 4, %s23
      %s375 = smul.u32 4, %s23
      %p376 = scmp.lt.s32.totalorder %s21, 1
      %s377 = scalar_select %p376, %s21, 1
      %p378 = scmp.lt.s32.totalorder %s22, 1
      %s379 = scalar_select %p378, %s22, 1
      %p380 = scmp.lt.s32.totalorder %s375, 7
      %s381 = scalar_select %p380, %s375, 7
      %s382 = smul.addr %s379, 8
      %s383 = sadd.s32 %s381, %s382
      %s384 = smul.addr %s377, 16
      %s385 = sadd.s32 %s383, %s384
      %s386 = smul.addr %s385, 8
      %s387 = scalar_lea.vmem %s1, %s386
      %s388 = smul.u32 4, %s23
      %s389 = smul.u32 4, %s23
      %p390 = scmp.lt.s32.totalorder %s21, 1
      %s391 = scalar_select %p390, %s21, 1
      %p392 = scmp.lt.s32.totalorder %s22, 1
      %s393 = scalar_select %p392, %s22, 1
      %p394 = scmp.lt.s32.totalorder %s389, 7
      %s395 = scalar_select %p394, %s389, 7
      %s396 = smul.addr %s393, 8
      %s397 = sadd.s32 %s395, %s396
      %s398 = smul.addr %s391, 16
      %s399 = sadd.s32 %s397, %s398
      %s400 = smul.addr %s399, 8
      %s401 = scalar_lea.vmem %s2, %s400
      %s402 = smul.u32 4, %s23
      %p403 = scmp.lt.s32.totalorder %s22, 1
      %s404 = scalar_select %p403, %s22, 1
      %s405 = scalar_lea.vmem %s3, %s404
      %p406 = scmp.lt.s32.totalorder %s22, 1
      %s407 = scalar_select %p406, %s22, 1
      %s408 = scalar_lea.vmem %s4, %s407
      %s409 = smul.u32 4, %s23
      %p410 = scmp.lt.s32.totalorder %s21, 1
      %s411 = scalar_select %p410, %s21, 1
      %p412 = scmp.lt.s32.totalorder %s22, 1
      %s413 = scalar_select %p412, %s22, 1
      %p414 = scmp.lt.s32.totalorder %s409, 7
      %s415 = scalar_select %p414, %s409, 7
      %s416 = smul.addr %s413, 8
      %s417 = sadd.s32 %s415, %s416
      %s418 = smul.addr %s411, 16
      %s419 = sadd.s32 %s417, %s418
      %s420 = smul.addr %s419, 8
      %s421 = scalar_lea.vmem %s5, %s420
      %s422 = smul.u32 4, %s23
      %p423 = scmp.eq.s32.totalorder %s23, 0
      // Predicated region
      $region41: #{tpu_custom_call.1} parent=39 // pred_check
        %p424 = pneg %p423
      $region42: #{tpu_custom_call.1} parent=39 // pred_check_branch
        %426 = sbr.rel (%p424) target = $region44
      $region43: #{tpu_custom_call.1} parent=39 // pred_region
        %vm427 = vcmask 130048
        %428 = vst.msk [vmem:[#allocation2] sm:$0xff] %vm427, 0.0
        %429 = vst.msk [vmem:[#allocation2 + $0x8] sm:$0xff] %vm427, 0.0
      $region44: #{tpu_custom_call.1} parent=39 // pred_fallthru
        _
      %v430 = vld [vmem:[%s405] sm:$0x1]
      %v431 = vld [vmem:[%s373] sm:$0xff]
      %v432 = vld [vmem:[%s373 + $0x8] sm:$0xff]
      %v433 = vld [vmem:[%s373 + $0x10] sm:$0xff]
      %v434 = vld [vmem:[%s373 + $0x18] sm:$0xff]
      %v435 = vld [vmem:[%s387] sm:$0xff]
      %v436 = vld [vmem:[%s387 + $0x8] sm:$0xff]
      %v437 = vld [vmem:[%s387 + $0x10] sm:$0xff]
      %v438 = vld [vmem:[%s387 + $0x18] sm:$0xff]
      %v439 = vld [vmem:[%s401] sm:$0xff]
      %v440 = vld [vmem:[%s401 + $0x8] sm:$0xff]
      %v441 = vld [vmem:[%s401 + $0x10] sm:$0xff]
      %v442 = vld [vmem:[%s401 + $0x18] sm:$0xff]
      %v443 = vlaneseq
      %v444 = vshrl.u32 %v443, 7
      %v445 = vadd.s32 %v444, 8
      %v446 = vadd.s32 %v444, 16
      %v447 = vadd.s32 %v444, 24
      %v448 = vcvt.s32.f32 %v444
      %v449 = vcvt.s32.f32 %v445
      %v450 = vcvt.s32.f32 %v446
      %v451 = vcvt.s32.f32 %v447
      %v453 = vlaneseq
      %v454 = vshrl.u32 %v453, 7
      %v455 = vsub.s32 0, %v454
      %v456 = vrot.slane %v430, %v455
      %v458 = vmul.f32 %v448, %v456
      %v459 = vmul.f32 %v449, %v456
      %v460 = vmul.f32 %v450, %v456
      %v461 = vmul.f32 %v451, %v456
      %v462 = vmul.f32 %v458, 1.442695
      %v463 = vpow.pop %v462
      %v464 = vmul.f32 %v459, 1.442695
      %v465 = vpow.pop %v464
      %v466 = vmul.f32 %v460, 1.442695
      %v467 = vpow.pop %v466
      %v468 = vmul.f32 %v461, 1.442695
      %v469 = vpow.pop %v468
      %v470 = vsub.f32 %v448, 15.5
      %v471 = vsub.f32 %v449, 15.5
      %v472 = vsub.f32 %v450, 15.5
      %v473 = vsub.f32 %v451, 15.5
      %v474 = vmul.f32 %v470, %v456
      %v475 = vmul.f32 %v471, %v456
      %v476 = vmul.f32 %v472, %v456
      %v477 = vmul.f32 %v473, %v456
      %v478 = vmul.f32 %v474, 1.442695
      %v479 = vpow.pop %v478
      %v480 = vmul.f32 %v475, 1.442695
      %v481 = vpow.pop %v480
      %v482 = vmul.f32 %v476, 1.442695
      %v483 = vpow.pop %v482
      %v484 = vmul.f32 %v477, 1.442695
      %v485 = vpow.pop %v484
      %v486 = vmul.f32 %v431, %v479
      %v487 = vmul.f32 %v432, %v481
      %v488 = vmul.f32 %v433, %v483
      %v489 = vmul.f32 %v434, %v485
      %v490 = vsub.f32 14.5, %v448
      %v491 = vsub.f32 14.5, %v449
      %v492 = vsub.f32 14.5, %v450
      %v493 = vsub.f32 14.5, %v451
      %v494 = vmul.f32 %v490, %v456
      %v495 = vmul.f32 %v491, %v456
      %v496 = vmul.f32 %v492, %v456
      %v497 = vmul.f32 %v493, %v456
      %v498 = vmul.f32 %v494, 1.442695
      %v499 = vpow.pop %v498
      %v500 = vmul.f32 %v495, 1.442695
      %v501 = vpow.pop %v500
      %v502 = vmul.f32 %v496, 1.442695
      %v503 = vpow.pop %v502
      %v504 = vmul.f32 %v497, 1.442695
      %v505 = vpow.pop %v504
      %v506 = vmul.f32 %v435, %v499
      %v507 = vmul.f32 %v436, %v501
      %v508 = vmul.f32 %v437, %v503
      %v509 = vmul.f32 %v438, %v505
      %v510 = vsub.f32 31.0, %v448
      %v511 = vsub.f32 31.0, %v449
      %v512 = vsub.f32 31.0, %v450
      %v513 = vsub.f32 31.0, %v451
      %v514 = vmul.f32 %v510, %v456
      %v515 = vmul.f32 %v511, %v456
      %v516 = vmul.f32 %v512, %v456
      %v517 = vmul.f32 %v513, %v456
      %v518 = vmul.f32 %v514, 1.442695
      %v519 = vpow.pop %v518
      %v520 = vmul.f32 %v515, 1.442695
      %v521 = vpow.pop %v520
      %v522 = vmul.f32 %v516, 1.442695
      %v523 = vpow.pop %v522
      %v524 = vmul.f32 %v517, 1.442695
      %v525 = vpow.pop %v524
      %v526 = vmul.f32 %v435, %v519
      %v527 = vmul.f32 %v436, %v521
      %v528 = vmul.f32 %v437, %v523
      %v529 = vmul.f32 %v438, %v525
      %v530 = vmul.f32 %v431, %v463
      %v531 = vmul.f32 %v432, %v465
      %v532 = vmul.f32 %v433, %v467
      %v533 = vmul.f32 %v434, %v469
      %v534 = vld [vmem:[#allocation2] sm:$0xff]
      %v535 = vld [vmem:[#allocation2 + $0x8] sm:$0xff]
      %vm536 = vcmask 130048
      %v538 = vsel %vm536, %v486, 0
      %v541 = vsel %vm536, %v487, 0
      %v544 = vsel %vm536, %v488, 0
      %v547 = vsel %vm536, %v489, 0
      %v550 = vsel %vm536, %v506, 0
      %v553 = vsel %vm536, %v507, 0
      %v556 = vsel %vm536, %v508, 0
      %v559 = vsel %vm536, %v509, 0
      %561 = vmatprep.subr.mxu0 0.0
      %562 = vmatpush1.xpose.msra.mxu0 0.0
      %563 = vmatprep.subr.mxu0 0.0
      %564 = vmatpush1.xpose.msra.mxu0 0.0
      %565 = vmatprep.subr.mxu0 0.0
      %566 = vmatpush1.xpose.msra.mxu0 0.0
      %567 = vmatprep.subr.mxu0 0.0
      %568 = vmatpush1.xpose.msra.mxu0 0.0
      %569 = vmatprep.subr.mxu0 0.0
      %570 = vmatpush1.xpose.msra.mxu0 0.0
      %571 = vmatprep.subr.mxu0 0.0
      %572 = vmatpush1.xpose.msra.mxu0 0.0
      %573 = vmatprep.subr.mxu0 0.0
      %574 = vmatpush1.xpose.msra.mxu0 0.0
      %575 = vmatprep.subr.mxu0 0.0
      %576 = vmatpush1.xpose.msra.mxu0 0.0
      %577 = vmatprep.subr.mxu0 0.0
      %578 = vmatpush1.xpose.msra.mxu0 0.0
      %579 = vmatprep.subr.mxu0 0.0
      %580 = vmatpush1.xpose.msra.mxu0 0.0
      %581 = vmatprep.subr.mxu0 0.0
      %582 = vmatpush1.xpose.msra.mxu0 0.0
      %583 = vmatprep.subr.mxu0 0.0
      %584 = vmatpush1.xpose.msra.mxu0 0.0
      %585 = vmatprep.subr.mxu0 0.0
      %586 = vmatpush1.xpose.msra.mxu0 %v559
      %587 = vmatprep.subr.mxu0 0.0
      %588 = vmatpush1.xpose.msra.mxu0 %v556
      %589 = vmatprep.subr.mxu0 0.0
      %590 = vmatpush1.xpose.msra.mxu0 %v553
      %591 = vmatprep.subr.mxu0 0.0
      %592 = vmatpush1.xpose.msra.mxu0 %v550
      %593 = vmatprep.subr.mxu0 0.0
      %594 = vmatpush2.xpose.msra.mxu0 0.0
      %595 = vmatprep.subr.mxu0 0.0
      %596 = vmatpush2.xpose.msra.mxu0 0.0
      %597 = vmatprep.subr.mxu0 0.0
      %598 = vmatpush2.xpose.msra.mxu0 0.0
      %599 = vmatprep.subr.mxu0 0.0
      %600 = vmatpush2.xpose.msra.mxu0 0.0
      %601 = vmatprep.subr.mxu0 0.0
      %602 = vmatpush2.xpose.msra.mxu0 0.0
      %603 = vmatprep.subr.mxu0 0.0
      %604 = vmatpush2.xpose.msra.mxu0 0.0
      %605 = vmatprep.subr.mxu0 0.0
      %606 = vmatpush2.xpose.msra.mxu0 0.0
      %607 = vmatprep.subr.mxu0 0.0
      %608 = vmatpush2.xpose.msra.mxu0 0.0
      %609 = vmatprep.subr.mxu0 0.0
      %610 = vmatpush2.xpose.msra.mxu0 0.0
      %611 = vmatprep.subr.mxu0 0.0
      %612 = vmatpush2.xpose.msra.mxu0 0.0
      %613 = vmatprep.subr.mxu0 0.0
      %614 = vmatpush2.xpose.msra.mxu0 0.0
      %615 = vmatprep.subr.mxu0 0.0
      %616 = vmatpush2.xpose.msra.mxu0 0.0
      %617 = vmatprep.subr.mxu0 0.0
      %618 = vmatpush2.xpose.msra.mxu0 0.0
      %619 = vmatprep.subr.mxu0 0.0
      %620 = vmatpush2.xpose.msra.mxu0 0.0
      %621 = vmatprep.subr.mxu0 0.0
      %622 = vmatpush2.xpose.msra.mxu0 0.0
      %623 = vmatprep.subr.mxu0 0.0
      %624 = vmatpush2.xpose.msra.mxu0 0.0
      %625 = vmatprep.mubr.f32.mxu0 0.0
      %626 = vmatmul.mubr.f32.gmra.mxu0 %v538
      %v627 = vpop.f32.mrf.mxu0
      %v628 = vadd.f32 0.0, %v627
      %v629 = vpop.f32.mrf.mxu0
      %630 = vmatprep.mubr.f32.mxu0 0.0
      %631 = vmatmul.mubr.f32.gmra.mxu0 %v541
      %v632 = vpop.f32.mrf.mxu0
      %v633 = vadd.f32 0.0, %v632
      %v634 = vpop.f32.mrf.mxu0
      %635 = vmatprep.mubr.f32.mxu0 0.0
      %636 = vmatmul.mubr.f32.gmra.mxu0 %v544
      %v637 = vpop.f32.mrf.mxu0
      %v638 = vadd.f32 0.0, %v637
      %v639 = vpop.f32.mrf.mxu0
      %640 = vmatprep.mubr.f32.mxu0 0.0
      %641 = vmatmul.mubr.f32.gmra.mxu0 %v547
      %v642 = vpop.f32.mrf.mxu0
      %v643 = vadd.f32 0.0, %v642
      %v644 = vpop.f32.mrf.mxu0
      %645 = vdwg.mxu0
      %v646 = vlaneseq
      %v647 = vand.u32 %v646, 127
      %vm648 = vcmp.lt.s32.totalorder %v647, %v444
      %vm649 = vcmp.lt.s32.totalorder %v647, %v445
      %vm650 = vcmp.lt.s32.totalorder %v647, %v446
      %vm651 = vcmp.lt.s32.totalorder %v647, %v447
      %v652 = vsel %vm648, %v628, 0.0
      %v653 = vsel %vm649, %v633, 0.0
      %v654 = vsel %vm650, %v638, 0.0
      %v655 = vsel %vm651, %v643, 0.0
      %vm656 = vcmask 261120
      %v658 = vsel %vm656, %v652, 0
      %v661 = vsel %vm656, %v653, 0
      %v664 = vsel %vm656, %v654, 0
      %v667 = vsel %vm656, %v655, 0
      %669 = vmatprep.subr.mxu0 0.0
      %670 = vmatpush1.msra.mxu0 0.0
      %671 = vmatprep.subr.mxu0 0.0
      %672 = vmatpush1.msra.mxu0 0.0
      %673 = vmatprep.subr.mxu0 0.0
      %674 = vmatpush1.msra.mxu0 0.0
      %675 = vmatprep.subr.mxu0 0.0
      %676 = vmatpush1.msra.mxu0 0.0
      %677 = vmatprep.subr.mxu0 0.0
      %678 = vmatpush1.msra.mxu0 0.0
      %679 = vmatprep.subr.mxu0 0.0
      %680 = vmatpush1.msra.mxu0 0.0
      %681 = vmatprep.subr.mxu0 0.0
      %682 = vmatpush1.msra.mxu0 0.0
      %683 = vmatprep.subr.mxu0 0.0
      %684 = vmatpush1.msra.mxu0 0.0
      %685 = vmatprep.subr.mxu0 0.0
      %686 = vmatpush1.msra.mxu0 0.0
      %687 = vmatprep.subr.mxu0 0.0
      %688 = vmatpush1.msra.mxu0 0.0
      %689 = vmatprep.subr.mxu0 0.0
      %690 = vmatpush1.msra.mxu0 0.0
      %691 = vmatprep.subr.mxu0 0.0
      %692 = vmatpush1.msra.mxu0 0.0
      %693 = vmatprep.subr.mxu0 0.0
      %694 = vmatpush1.msra.mxu0 %v442
      %695 = vmatprep.subr.mxu0 0.0
      %696 = vmatpush1.msra.mxu0 %v441
      %697 = vmatprep.subr.mxu0 0.0
      %698 = vmatpush1.msra.mxu0 %v440
      %699 = vmatprep.subr.mxu0 0.0
      %700 = vmatpush1.msra.mxu0 %v439
      %701 = vmatprep.subr.mxu0 0.0
      %702 = vmatpush2.msra.mxu0 0.0
      %703 = vmatprep.subr.mxu0 0.0
      %704 = vmatpush2.msra.mxu0 0.0
      %705 = vmatprep.subr.mxu0 0.0
      %706 = vmatpush2.msra.mxu0 0.0
      %707 = vmatprep.subr.mxu0 0.0
      %708 = vmatpush2.msra.mxu0 0.0
      %709 = vmatprep.subr.mxu0 0.0
      %710 = vmatpush2.msra.mxu0 0.0
      %711 = vmatprep.subr.mxu0 0.0
      %712 = vmatpush2.msra.mxu0 0.0
      %713 = vmatprep.subr.mxu0 0.0
      %714 = vmatpush2.msra.mxu0 0.0
      %715 = vmatprep.subr.mxu0 0.0
      %716 = vmatpush2.msra.mxu0 0.0
      %717 = vmatprep.subr.mxu0 0.0
      %718 = vmatpush2.msra.mxu0 0.0
      %719 = vmatprep.subr.mxu0 0.0
      %720 = vmatpush2.msra.mxu0 0.0
      %721 = vmatprep.subr.mxu0 0.0
      %722 = vmatpush2.msra.mxu0 0.0
      %723 = vmatprep.subr.mxu0 0.0
      %724 = vmatpush2.msra.mxu0 0.0
      %725 = vmatprep.subr.mxu0 0.0
      %726 = vmatpush2.msra.mxu0 0.0
      %727 = vmatprep.subr.mxu0 0.0
      %728 = vmatpush2.msra.mxu0 0.0
      %729 = vmatprep.subr.mxu0 0.0
      %730 = vmatpush2.msra.mxu0 0.0
      %731 = vmatprep.subr.mxu0 0.0
      %732 = vmatpush2.msra.mxu0 0.0
      %733 = vmatprep.mubr.f32.mxu0 0.0
      %734 = vmatmul.mubr.f32.gmra.mxu0 %v658
      %v735 = vpop.f32.mrf.mxu0
      %v736 = vadd.f32 0.0, %v735
      %v737 = vpop.f32.mrf.mxu0
      %738 = vmatprep.mubr.f32.mxu0 0.0
      %739 = vmatmul.mubr.f32.gmra.mxu0 %v661
      %v740 = vpop.f32.mrf.mxu0
      %v741 = vadd.f32 0.0, %v740
      %v742 = vpop.f32.mrf.mxu0
      %743 = vmatprep.mubr.f32.mxu0 0.0
      %744 = vmatmul.mubr.f32.gmra.mxu0 %v664
      %v745 = vpop.f32.mrf.mxu0
      %v746 = vadd.f32 0.0, %v745
      %v747 = vpop.f32.mrf.mxu0
      %748 = vmatprep.mubr.f32.mxu0 0.0
      %749 = vmatmul.mubr.f32.gmra.mxu0 %v667
      %v750 = vpop.f32.mrf.mxu0
      %v751 = vadd.f32 0.0, %v750
      %v752 = vpop.f32.mrf.mxu0
      %753 = vdwg.mxu0
      %v755 = vsel %vm536, %v530, 0
      %v758 = vsel %vm536, %v531, 0
      %v761 = vsel %vm536, %v532, 0
      %v764 = vsel %vm536, %v533, 0
      %766 = vmatprep.subr.mxu0 0.0
      %767 = vmatpush1.msra.mxu0 0.0
      %768 = vmatprep.subr.mxu0 0.0
      %769 = vmatpush1.msra.mxu0 0.0
      %770 = vmatprep.subr.mxu0 0.0
      %771 = vmatpush1.msra.mxu0 0.0
      %772 = vmatprep.subr.mxu0 0.0
      %773 = vmatpush1.msra.mxu0 0.0
      %774 = vmatprep.subr.mxu0 0.0
      %775 = vmatpush1.msra.mxu0 0.0
      %776 = vmatprep.subr.mxu0 0.0
      %777 = vmatpush1.msra.mxu0 0.0
      %778 = vmatprep.subr.mxu0 0.0
      %779 = vmatpush1.msra.mxu0 0.0
      %780 = vmatprep.subr.mxu0 0.0
      %781 = vmatpush1.msra.mxu0 0.0
      %782 = vmatprep.subr.mxu0 0.0
      %783 = vmatpush1.msra.mxu0 0.0
      %784 = vmatprep.subr.mxu0 0.0
      %785 = vmatpush1.msra.mxu0 0.0
      %786 = vmatprep.subr.mxu0 0.0
      %787 = vmatpush1.msra.mxu0 0.0
      %788 = vmatprep.subr.mxu0 0.0
      %789 = vmatpush1.msra.mxu0 0.0
      %790 = vmatprep.subr.mxu0 0.0
      %791 = vmatpush1.msra.mxu0 0.0
      %792 = vmatprep.subr.mxu0 0.0
      %793 = vmatpush1.msra.mxu0 0.0
      %794 = vmatprep.subr.mxu0 0.0
      %795 = vmatpush1.msra.mxu0 %v535
      %796 = vmatprep.subr.mxu0 0.0
      %797 = vmatpush1.msra.mxu0 %v534
      %798 = vmatprep.subr.mxu0 0.0
      %799 = vmatpush2.msra.mxu0 0.0
      %800 = vmatprep.subr.mxu0 0.0
      %801 = vmatpush2.msra.mxu0 0.0
      %802 = vmatprep.subr.mxu0 0.0
      %803 = vmatpush2.msra.mxu0 0.0
      %804 = vmatprep.subr.mxu0 0.0
      %805 = vmatpush2.msra.mxu0 0.0
      %806 = vmatprep.subr.mxu0 0.0
      %807 = vmatpush2.msra.mxu0 0.0
      %808 = vmatprep.subr.mxu0 0.0
      %809 = vmatpush2.msra.mxu0 0.0
      %810 = vmatprep.subr.mxu0 0.0
      %811 = vmatpush2.msra.mxu0 0.0
      %812 = vmatprep.subr.mxu0 0.0
      %813 = vmatpush2.msra.mxu0 0.0
      %814 = vmatprep.subr.mxu0 0.0
      %815 = vmatpush2.msra.mxu0 0.0
      %816 = vmatprep.subr.mxu0 0.0
      %817 = vmatpush2.msra.mxu0 0.0
      %818 = vmatprep.subr.mxu0 0.0
      %819 = vmatpush2.msra.mxu0 0.0
      %820 = vmatprep.subr.mxu0 0.0
      %821 = vmatpush2.msra.mxu0 0.0
      %822 = vmatprep.subr.mxu0 0.0
      %823 = vmatpush2.msra.mxu0 0.0
      %824 = vmatprep.subr.mxu0 0.0
      %825 = vmatpush2.msra.mxu0 0.0
      %826 = vmatprep.subr.mxu0 0.0
      %827 = vmatpush2.msra.mxu0 0.0
      %828 = vmatprep.subr.mxu0 0.0
      %829 = vmatpush2.msra.mxu0 0.0
      %830 = vmatprep.mubr.f32.mxu0 0.0
      %831 = vmatmul.mubr.f32.gmra.mxu0 %v755
      %v832 = vpop.f32.mrf.mxu0
      %v833 = vadd.f32 %v736, %v832
      %v834 = vpop.f32.mrf.mxu0
      %835 = vmatprep.mubr.f32.mxu0 0.0
      %836 = vmatmul.mubr.f32.gmra.mxu0 %v758
      %v837 = vpop.f32.mrf.mxu0
      %v838 = vadd.f32 %v741, %v837
      %v839 = vpop.f32.mrf.mxu0
      %840 = vmatprep.mubr.f32.mxu0 0.0
      %841 = vmatmul.mubr.f32.gmra.mxu0 %v761
      %v842 = vpop.f32.mrf.mxu0
      %v843 = vadd.f32 %v746, %v842
      %v844 = vpop.f32.mrf.mxu0
      %845 = vmatprep.mubr.f32.mxu0 0.0
      %846 = vmatmul.mubr.f32.gmra.mxu0 %v764
      %v847 = vpop.f32.mrf.mxu0
      %v848 = vadd.f32 %v751, %v847
      %v849 = vpop.f32.mrf.mxu0
      %850 = vdwg.mxu0
      %v851 = vld [vmem:[%s408] sm:$0x1]
      %v853 = vlaneseq
      %v854 = vshrl.u32 %v853, 7
      %v855 = vsub.s32 0, %v854
      %v856 = vrot.slane %v851, %v855
      %v858 = vmul.f32 %v431, %v856
      %v859 = vmul.f32 %v432, %v856
      %v860 = vmul.f32 %v433, %v856
      %v861 = vmul.f32 %v434, %v856
      %v862 = vmul.f32 %v858, %v435
      %v863 = vmul.f32 %v859, %v436
      %v864 = vmul.f32 %v860, %v437
      %v865 = vmul.f32 %v861, %v438
      %v866 = vsel %vm536, %v862, 0.0
      %867 = vadd.xlane.f32.xlu0 %v866
      %v868 = vpop.xlane.xlu0 %867
      %v869 = vsel %vm536, %v863, 0.0
      %870 = vadd.xlane.f32.xlu0 %v869
      %v871 = vpop.xlane.xlu0 %870
      %v872 = vsel %vm536, %v864, 0.0
      %873 = vadd.xlane.f32.xlu0 %v872
      %v874 = vpop.xlane.xlu0 %873
      %v875 = vsel %vm536, %v865, 0.0
      %876 = vadd.xlane.f32.xlu0 %v875
      %v877 = vpop.xlane.xlu0 %876
      %v878 = vmul.f32 %v868, %v439
      %v879 = vmul.f32 %v871, %v440
      %v880 = vmul.f32 %v874, %v441
      %v881 = vmul.f32 %v877, %v442
      %v882 = vadd.f32 %v833, %v878
      %v883 = vadd.f32 %v838, %v879
      %v884 = vadd.f32 %v843, %v880
      %v885 = vadd.f32 %v848, %v881
      %886 = vst.msk [vmem:[%s421] sm:$0xff] %vm536, %v882
      %887 = vst.msk [vmem:[%s421 + $0x8] sm:$0xff] %vm536, %v883
      %888 = vst.msk [vmem:[%s421 + $0x10] sm:$0xff] %vm536, %v884
      %889 = vst.msk [vmem:[%s421 + $0x18] sm:$0xff] %vm536, %v885
      %890 = vxpose.xlu0.b32.start [1/16] %v526, 128
      %891 = vxpose.xlu0.b32.cont [2/16] %v527, 128
      %892 = vxpose.xlu0.b32.cont [3/16] %v528, 128
      %893 = vxpose.xlu0.b32.cont [4/16] %v529, 128
      %894 = vxpose.xlu0.b32.cont [5/16] 0.0, 128
      %895 = vxpose.xlu0.b32.cont [6/16] 0.0, 128
      %896 = vxpose.xlu0.b32.cont [7/16] 0.0, 128
      %897 = vxpose.xlu0.b32.cont [8/16] 0.0, 128
      %898 = vxpose.xlu0.b32.cont [9/16] 0.0, 128
      %899 = vxpose.xlu0.b32.cont [10/16] 0.0, 128
      %900 = vxpose.xlu0.b32.cont [11/16] 0.0, 128
      %901 = vxpose.xlu0.b32.cont [12/16] 0.0, 128
      %902 = vxpose.xlu0.b32.cont [13/16] 0.0, 128
      %903 = vxpose.xlu0.b32.cont [14/16] 0.0, 128
      %904 = vxpose.xlu0.b32.cont [15/16] 0.0, 128
      %905 = vxpose.xlu0.b32.end [16/16] 0.0, 128
      %v906 = vpop.trf.xlu0
      %v907 = vpop.trf.xlu0
      %v908 = vpop.trf.xlu0
      %v909 = vpop.trf.xlu0
      %v910 = vpop.trf.xlu0
      %v911 = vpop.trf.xlu0
      %v912 = vpop.trf.xlu0
      %v913 = vpop.trf.xlu0
      %v914 = vpop.trf.xlu0
      %v915 = vpop.trf.xlu0
      %v916 = vpop.trf.xlu0
      %v917 = vpop.trf.xlu0
      %v918 = vpop.trf.xlu0
      %v919 = vpop.trf.xlu0
      %v920 = vpop.trf.xlu0
      %v921 = vpop.trf.xlu0
      %v923 = vsel %vm656, %v906, 0
      %v926 = vsel %vm656, %v907, 0
      %928 = vmatprep.subr.mxu0 0.0
      %929 = vmatpush1.msra.mxu0 0.0
      %930 = vmatprep.subr.mxu0 0.0
      %931 = vmatpush1.msra.mxu0 0.0
      %932 = vmatprep.subr.mxu0 0.0
      %933 = vmatpush1.msra.mxu0 0.0
      %934 = vmatprep.subr.mxu0 0.0
      %935 = vmatpush1.msra.mxu0 0.0
      %936 = vmatprep.subr.mxu0 0.0
      %937 = vmatpush1.msra.mxu0 0.0
      %938 = vmatprep.subr.mxu0 0.0
      %939 = vmatpush1.msra.mxu0 0.0
      %940 = vmatprep.subr.mxu0 0.0
      %941 = vmatpush1.msra.mxu0 0.0
      %942 = vmatprep.subr.mxu0 0.0
      %943 = vmatpush1.msra.mxu0 0.0
      %944 = vmatprep.subr.mxu0 0.0
      %945 = vmatpush1.msra.mxu0 0.0
      %946 = vmatprep.subr.mxu0 0.0
      %947 = vmatpush1.msra.mxu0 0.0
      %948 = vmatprep.subr.mxu0 0.0
      %949 = vmatpush1.msra.mxu0 0.0
      %950 = vmatprep.subr.mxu0 0.0
      %951 = vmatpush1.msra.mxu0 0.0
      %952 = vmatprep.subr.mxu0 0.0
      %953 = vmatpush1.msra.mxu0 %v442
      %954 = vmatprep.subr.mxu0 0.0
      %955 = vmatpush1.msra.mxu0 %v441
      %956 = vmatprep.subr.mxu0 0.0
      %957 = vmatpush1.msra.mxu0 %v440
      %958 = vmatprep.subr.mxu0 0.0
      %959 = vmatpush1.msra.mxu0 %v439
      %960 = vmatprep.subr.mxu0 0.0
      %961 = vmatpush2.msra.mxu0 0.0
      %962 = vmatprep.subr.mxu0 0.0
      %963 = vmatpush2.msra.mxu0 0.0
      %964 = vmatprep.subr.mxu0 0.0
      %965 = vmatpush2.msra.mxu0 0.0
      %966 = vmatprep.subr.mxu0 0.0
      %967 = vmatpush2.msra.mxu0 0.0
      %968 = vmatprep.subr.mxu0 0.0
      %969 = vmatpush2.msra.mxu0 0.0
      %970 = vmatprep.subr.mxu0 0.0
      %971 = vmatpush2.msra.mxu0 0.0
      %972 = vmatprep.subr.mxu0 0.0
      %973 = vmatpush2.msra.mxu0 0.0
      %974 = vmatprep.subr.mxu0 0.0
      %975 = vmatpush2.msra.mxu0 0.0
      %976 = vmatprep.subr.mxu0 0.0
      %977 = vmatpush2.msra.mxu0 0.0
      %978 = vmatprep.subr.mxu0 0.0
      %979 = vmatpush2.msra.mxu0 0.0
      %980 = vmatprep.subr.mxu0 0.0
      %981 = vmatpush2.msra.mxu0 0.0
      %982 = vmatprep.subr.mxu0 0.0
      %983 = vmatpush2.msra.mxu0 0.0
      %984 = vmatprep.subr.mxu0 0.0
      %985 = vmatpush2.msra.mxu0 0.0
      %986 = vmatprep.subr.mxu0 0.0
      %987 = vmatpush2.msra.mxu0 0.0
      %988 = vmatprep.subr.mxu0 0.0
      %989 = vmatpush2.msra.mxu0 0.0
      %990 = vmatprep.subr.mxu0 0.0
      %991 = vmatpush2.msra.mxu0 0.0
      %992 = vmatprep.mubr.f32.mxu0 0.0
      %993 = vmatmul.mubr.f32.gmra.mxu0 %v923
      %v994 = vpop.f32.mrf.mxu0
      %v995 = vadd.f32 0.0, %v994
      %v996 = vpop.f32.mrf.mxu0
      %997 = vmatprep.mubr.f32.mxu0 0.0
      %998 = vmatmul.mubr.f32.gmra.mxu0 %v926
      %v999 = vpop.f32.mrf.mxu0
      %v1000 = vadd.f32 0.0, %v999
      %v1001 = vpop.f32.mrf.mxu0
      %1002 = vdwg.mxu0
      %v1003 = vmul.f32 %v430, 32.0
      %v1004 = vmul.f32 %v1003, 1.442695
      %v1005 = vpow.pop %v1004
      %1006 = vxpose.xlu0.b32.start [1/16] %v1005, 128
      %1007 = vxpose.xlu0.b32.cont [2/16] 0.0, 128
      %1008 = vxpose.xlu0.b32.cont [3/16] 0.0, 128
      %1009 = vxpose.xlu0.b32.cont [4/16] 0.0, 128
      %1010 = vxpose.xlu0.b32.cont [5/16] 0.0, 128
      %1011 = vxpose.xlu0.b32.cont [6/16] 0.0, 128
      %1012 = vxpose.xlu0.b32.cont [7/16] 0.0, 128
      %1013 = vxpose.xlu0.b32.cont [8/16] 0.0, 128
      %1014 = vxpose.xlu0.b32.cont [9/16] 0.0, 128
      %1015 = vxpose.xlu0.b32.cont [10/16] 0.0, 128
      %1016 = vxpose.xlu0.b32.cont [11/16] 0.0, 128
      %1017 = vxpose.xlu0.b32.cont [12/16] 0.0, 128
      %1018 = vxpose.xlu0.b32.cont [13/16] 0.0, 128
      %1019 = vxpose.xlu0.b32.cont [14/16] 0.0, 128
      %1020 = vxpose.xlu0.b32.cont [15/16] 0.0, 128
      %1021 = vxpose.xlu0.b32.end [16/16] 0.0, 128
      %v1022 = vpop.trf.xlu0
      %v1023 = vpop.trf.xlu0
      %v1024 = vpop.trf.xlu0
      %v1025 = vpop.trf.xlu0
      %v1026 = vpop.trf.xlu0
      %v1027 = vpop.trf.xlu0
      %v1028 = vpop.trf.xlu0
      %v1029 = vpop.trf.xlu0
      %v1030 = vpop.trf.xlu0
      %v1031 = vpop.trf.xlu0
      %v1032 = vpop.trf.xlu0
      %v1033 = vpop.trf.xlu0
      %v1034 = vpop.trf.xlu0
      %v1035 = vpop.trf.xlu0
      %v1036 = vpop.trf.xlu0
      %v1037 = vpop.trf.xlu0
      %v1038 = vld [vmem:[#allocation2] sm:$0xff]
      %v1039 = vld [vmem:[#allocation2 + $0x8] sm:$0xff]
      %1041 = vset.pattern.permute.xlu0 0
      %1042 = vperm.xlu0 %1041, %v1022
      %v1043 = vpop.permute.xlu0 %1042
      %1046 = vset.pattern.permute.xlu0 0
      %1047 = vperm.xlu0 %1046, %v1023
      %v1048 = vpop.permute.xlu0 %1047
      %v1050 = vmul.f32 %v1043, %v1038
      %v1051 = vmul.f32 %v1048, %v1039
      %v1052 = vadd.f32 %v1050, %v995
      %v1053 = vadd.f32 %v1051, %v1000
      %1054 = vst.msk [vmem:[#allocation2] sm:$0xff] %vm536, %v1052
      %1055 = vst.msk [vmem:[#allocation2 + $0x8] sm:$0xff] %vm536, %v1053
      %s1056 = smul.u32 4, %s23
      %p1057 = scmp.lt.s32.totalorder %s21, 1
      %s1058 = scalar_select %p1057, %s21, 1
      %p1059 = scmp.lt.s32.totalorder %s22, 1
      %s1060 = scalar_select %p1059, %s22, 1
      %p1061 = scmp.lt.s32.totalorder %s1056, 7
      %s1062 = scalar_select %p1061, %s1056, 7
      %s1063 = smul.addr %s1060, 8
      %s1064 = sadd.s32 %s1062, %s1063
      %s1065 = smul.addr %s1058, 16
      %s1066 = sadd.s32 %s1064, %s1065
      %s1067 = smul.addr %s1066, 8
      %s1068 = scalar_lea.vmem %s5, %s1067
      // Predicated region
      $region45: #{tpu_custom_call.1} parent=39 // pred_check
        %p1069 = pneg %p199
      $region46: #{tpu_custom_call.1} parent=39 // pred_check_branch
        %1071 = sbr.rel (%p1069) target = $region48
      $region47: #{tpu_custom_call.1} parent=39 // pred_region
        %s1072 = smul.u32 4, %s23
      $region48: #{tpu_custom_call.1} parent=39 // pred_fallthru
        _
    $region40: #{tpu_custom_call.1} parent=5 // pred_fallthru
      _
    %p1073 = scmp.le.s32.totalorder 2, %s11
    // Predicated region
    $region49: #{tpu_custom_call.1} parent=5 // pred_check
      %p1074 = pneg %p1073
    $region50: #{tpu_custom_call.1} parent=5 // pred_check_branch
      %1076 = sbr.rel (%p1074) target = $region52
    $region51: #{tpu_custom_call.1} parent=5 // pred_region
      %s1077 = ssub.s32 %s11, 2
      // Predicated region
      $region53: #{tpu_custom_call.1} parent=51 // pred_check
        %p1078 = pneg %p205
      $region54: #{tpu_custom_call.1} parent=51 // pred_check_branch
        %1080 = sbr.rel (%p1078) target = $region56
      $region55: #{tpu_custom_call.1} parent=51 // pred_region
        %s1081 = smul.u32 4, %s26
        %p1082 = scmp.lt.s32.totalorder %s24, 1
        %s1083 = scalar_select %p1082, %s24, 1
        %p1084 = scmp.lt.s32.totalorder %s25, 1
        %s1085 = scalar_select %p1084, %s25, 1
        %p1086 = scmp.lt.s32.totalorder %s1081, 7
        %s1087 = scalar_select %p1086, %s1081, 7
        %s1088 = smul.addr %s1085, 8
        %s1089 = sadd.s32 %s1087, %s1088
        %s1090 = smul.addr %s1083, 16
        %s1091 = sadd.s32 %s1089, %s1090
        %s1092 = smul.addr %s1091, 8
        %s1093 = scalar_lea.vmem %s5, %s1092
      $region56: #{tpu_custom_call.1} parent=51 // pred_fallthru
        _
    $region52: #{tpu_custom_call.1} parent=5 // pred_fallthru
      _
  $region6: #{tpu_custom_call.1} parent=0 // loop_footer
    %s15 = sadd.s32 1, %s11
  $region7: #{tpu_custom_call.1} parent=0 // loop_footer_branch
    %10 = sbr.rel target = $region3
  $region8: #{tpu_custom_call.1} parent=0 // loop_exit
    _

</llo_original>
